<compile_context>
chip_gen: v5e
topology: v5e:2x2
jax: 0.10.0
libtpu: 0.0.40
codegen_flags: <defaults>
</compile_context>

<pallas_src>
import functools
import math

import jax
import jax.numpy as jnp
from jax import lax
from jax.experimental import pallas as pl
from jax.experimental.pallas import tpu as pltpu

EPS = 1e-5


def _round_up(x, m):
    return (x + m - 1) // m * m


# ---------------------------------------------------------------------------
# Pallas kernel 1: fused matmul  y = act((x @ w) * scale + shift)
#   x, w are bf16 (MXU-native); accumulation is f32 in a VMEM scratch.
# ---------------------------------------------------------------------------
def _mm_kernel(x_ref, w_ref, s_ref, b_ref, o_ref, acc_ref, *, act):
    @pl.when(pl.program_id(2) == 0)
    def _():
        acc_ref[...] = jnp.zeros_like(acc_ref)

    acc_ref[...] += jnp.dot(x_ref[...], w_ref[...],
                            preferred_element_type=jnp.float32)

    @pl.when(pl.program_id(2) == pl.num_programs(2) - 1)
    def _():
        y = acc_ref[...] * s_ref[...] + b_ref[...]
        if act == "relu":
            y = jnp.maximum(y, 0.0)
        o_ref[...] = y.astype(o_ref.dtype)


_MM_CACHE = {}


def _get_mm_fn(Mp, Kp, Np, tm, tk, tn, act):
    key = (Mp, Kp, Np, tm, tk, tn, act)
    if key not in _MM_CACHE:
        _MM_CACHE[key] = pl.pallas_call(
            functools.partial(_mm_kernel, act=act),
            out_shape=jax.ShapeDtypeStruct((Mp, Np), jnp.float32),
            grid_spec=pltpu.PrefetchScalarGridSpec(
                num_scalar_prefetch=0,
                # K innermost ("arbitrary") so the accumulator pattern holds.
                grid=(Mp // tm, Np // tn, Kp // tk),
                in_specs=[
                    pl.BlockSpec((tm, tk), lambda i, j, k: (i, k)),
                    pl.BlockSpec((tk, tn), lambda i, j, k: (k, j)),
                    pl.BlockSpec((1, tn), lambda i, j, k: (0, j)),
                    pl.BlockSpec((1, tn), lambda i, j, k: (0, j)),
                ],
                out_specs=pl.BlockSpec((tm, tn), lambda i, j, k: (i, j)),
                scratch_shapes=[pltpu.VMEM((tm, tn), jnp.float32)],
            ),
            compiler_params=pltpu.CompilerParams(
                dimension_semantics=("parallel", "parallel", "arbitrary")),
        )
    return _MM_CACHE[key]


def _pick_tk(K):
    if K <= 640:
        return _round_up(K, 128)
    best_pad, best_tk = None, None
    for cand in (512, 384, 256):          # minimize zero-padding of K
        pad = (-K) % cand
        if best_pad is None or pad < best_pad:
            best_pad, best_tk = pad, cand
    return best_tk


def matmul_scale_shift_act(x, w, scale, shift, act="none"):
    """x:(M,K)  w:(K,N)  scale/shift:(N,) -> f32 (M,N); operands cast to bf16."""
    M, K = x.shape
    _, N = w.shape
    tk = _pick_tk(K)
    Kp = _round_up(K, tk)
    Mp0 = _round_up(M, 8)
    tm = min(512, Mp0)
    Mp = _round_up(Mp0, tm)
    Np = _round_up(N, 128)
    tn = 256 if Np % 256 == 0 else 128
    xp = jnp.pad(x.astype(jnp.bfloat16), ((0, Mp - M), (0, Kp - K)))
    wp = jnp.pad(w.astype(jnp.bfloat16), ((0, Kp - K), (0, Np - N)))
    sp = jnp.pad(scale.astype(jnp.float32), (0, Np - N)).reshape(1, Np)
    bp = jnp.pad(shift.astype(jnp.float32), (0, Np - N)).reshape(1, Np)
    out = _get_mm_fn(Mp, Kp, Np, tm, tk, tn, act)(xp, wp, sp, bp)
    # Padded rows/cols are sliced off here (fused into the surrounding jit).
    return out[:M, :N]


# ---------------------------------------------------------------------------
# Pallas kernel 2: sequential selective-SSM scan
#   h_t = exp(dt_t x A) * h_{t-1} + (dt_t * u_t) x B_t ;  y_t[d] = sum_n h C_t
#   * dA / dBx built in-kernel, vectorized per chunk (exp -> EUP).
#   * recurrence carried as a register value; h_t buffered in VMEM scratch.
#   * one contraction + one lane-dense (D, T) output store per chunk.
# ---------------------------------------------------------------------------
def _ssm_scan_kernel(dt_ref, u_ref, b_ref, c_ref, a_ref, y_ref,
                     hbuf_ref, da_ref, dbx_ref, *, T):
    # dt_ref/u_ref: (L, D, 1)   b_ref/c_ref: (L, 1, N)   a_ref: (D, N)
    L, D = dt_ref.shape[0], dt_ref.shape[1]
    N = b_ref.shape[-1]
    A = a_ref[...]
    h = jnp.zeros((D, N), jnp.float32)

    for chunk in range(L // T):
        off = chunk * T
        dt_c = dt_ref[pl.ds(off, T)]                 # (T, D, 1)
        u_c = u_ref[pl.ds(off, T)]                   # (T, D, 1)
        b_c = b_ref[pl.ds(off, T)]                   # (T, 1, N)
        c_c = c_ref[pl.ds(off, T)]                   # (T, 1, N)

        # Fused, vectorized construction of dA / dBx for the whole chunk.
        da_ref[...] = jnp.exp(dt_c * A)              # (T, D, N)
        dbx_ref[...] = (dt_c * u_c) * b_c            # (T, D, N)

        def step(t, hc):
            hc = da_ref[t] * hc + dbx_ref[t]
            hbuf_ref[t] = hc
            return hc

        h = lax.fori_loop(0, T, step, h, unroll=True if T <= 8 else 4)

        # Chunk contraction against C_t and a lane-dense (D, T) store.
        yc = jnp.sum(hbuf_ref[...] * c_c, axis=-1)   # (T, D)
        y_ref[:, pl.ds(off, T)] = jnp.transpose(yc, (1, 0)).astype(y_ref.dtype)


_SCAN_CACHE = {}


def ssm_scan(dt, u, Bm, Cm, A_b):
    """dt,u:(Bt,L,D)  Bm,Cm:(Bt,L,N)  A_b:(Bt,D,N)  ->  y:(Bt,D,L) f32."""
    Bt, L, D = dt.shape
    N = Bm.shape[-1]
    T = 128 if (L >= 128 and L % 128 == 0) else L
    key = (Bt, L, D, N, T)
    if key not in _SCAN_CACHE:
        _SCAN_CACHE[key] = pl.pallas_call(
            functools.partial(_ssm_scan_kernel, T=T),
            out_shape=jax.ShapeDtypeStruct((Bt, D, L), jnp.float32),
            grid=(Bt,),
            in_specs=[pl.BlockSpec((None, L, D, 1), lambda b: (b, 0, 0, 0)),
                      pl.BlockSpec((None, L, D, 1), lambda b: (b, 0, 0, 0)),
                      pl.BlockSpec((None, L, 1, N), lambda b: (b, 0, 0, 0)),
                      pl.BlockSpec((None, L, 1, N), lambda b: (b, 0, 0, 0)),
                      pl.BlockSpec((None, D, N), lambda b: (b, 0, 0))],
            out_specs=pl.BlockSpec((None, D, L), lambda b: (b, 0, 0)),
            scratch_shapes=[pltpu.VMEM((T, D, N), jnp.float32),
                            pltpu.VMEM((T, D, N), jnp.float32),
                            pltpu.VMEM((T, D, N), jnp.float32)],
            compiler_params=pltpu.CompilerParams(
                dimension_semantics=("parallel",)),
        )
    return _SCAN_CACHE[key](
        dt.astype(jnp.float32)[..., None],
        u.astype(jnp.float32)[..., None],
        Bm.astype(jnp.float32)[:, :, None, :],
        Cm.astype(jnp.float32)[:, :, None, :],
        A_b.astype(jnp.float32))


# ---------------------------------------------------------------------------
# Per-shape jitted wrappers (glue fused with the Pallas kernels; executables
# reused across call sites with identical shapes).
# ---------------------------------------------------------------------------
def im2col(x, k, pad):
    B, H, W, C = x.shape
    if k == 1:
        return x.reshape(B * H * W, C)
    xp = jnp.pad(x, ((0, 0), (pad, pad), (pad, pad), (0, 0)))
    cols = [xp[:, dy:dy + H, dx:dx + W, :] for dy in range(k) for dx in range(k)]
    return jnp.concatenate(cols, axis=-1).reshape(B * H * W, k * k * C)


@functools.partial(jax.jit, static_argnames=("k", "act"))
def _conv2d_jit(x, wmat, out_scale, out_shift, in_scale, in_shift, k, act):
    B, H, W, C = x.shape
    x = x * in_scale + in_shift          # folded input BatchNorm (pre-padding)
    pad = (k - 1) // 2 if k > 1 else 0
    # TODO(synk): im2col is still materialized (bf16, fused in this jit); an
    #             in-kernel tap loop over the K grid dim would avoid it.
    cols = im2col(x.astype(jnp.bfloat16), k, pad)
    y = matmul_scale_shift_act(cols, wmat, out_scale, out_shift, act=act)
    return y.reshape(B, H, W, wmat.shape[1])


@functools.partial(jax.jit, static_argnames=("act",))
def _matmul_jit(x, w, scale, shift, act):
    return matmul_scale_shift_act(x, w, scale, shift, act=act)


@jax.jit
def _ssm_apply_jit(dt, u, Bm, Cm, A_b, D_b):
    y = ssm_scan(dt, u, Bm, Cm, A_b)                     # (Bt, D, L)
    return y + D_b[:, :, None] * jnp.transpose(u, (0, 2, 1))


# ---------------------------------------------------------------------------
# Parameter construction (deterministic, from PRNGKey(0))
# ---------------------------------------------------------------------------
class KeyGen:
    def __init__(self, seed=0):
        self.key = jax.random.PRNGKey(seed)

    def __call__(self):
        self.key, sub = jax.random.split(self.key)
        return sub


def init_conv(kg, cin, cout, k, bias=True):
    fan_in = cin * k * k
    w = jax.random.normal(kg(), (cout, cin, k, k), jnp.float32) / math.sqrt(fan_in)
    b = (jax.random.normal(kg(), (cout,), jnp.float32) * 0.01) if bias else None
    return {"w": w, "b": b, "k": k}


def init_bn(c):
    return {"gamma": jnp.ones((c,), jnp.float32),
            "beta": jnp.zeros((c,), jnp.float32),
            "mean": jnp.zeros((c,), jnp.float32),
            "var": jnp.ones((c,), jnp.float32)}


def init_linear(kg, cin, cout, bias=True):
    w = jax.random.normal(kg(), (cin, cout), jnp.float32) / math.sqrt(cin)
    b = jnp.zeros((cout,), jnp.float32) if bias else None
    return {"w": w, "b": b}


def bn_affine(bn):
    scale = bn["gamma"] / jnp.sqrt(bn["var"] + EPS)
    shift = bn["beta"] - bn["mean"] * scale
    return scale, shift


# ---------------------------------------------------------------------------
# Layer helpers
# ---------------------------------------------------------------------------
def conv2d(x, conv, bn=None, act="none", in_affine=None):
    C = x.shape[-1]
    k = conv["k"]
    w = conv["w"]                                        # (cout, cin, k, k)
    cout = w.shape[0]
    wmat = jnp.transpose(w, (2, 3, 1, 0)).reshape(k * k * C, cout)
    if bn is not None:                                   # conv -> BN (-> relu)
        out_scale, out_shift = bn_affine(bn)
        if conv["b"] is not None:
            out_shift = out_shift + out_scale * conv["b"]
    else:
        out_scale = jnp.ones((cout,), jnp.float32)
        out_shift = conv["b"] if conv["b"] is not None else jnp.zeros((cout,), jnp.float32)
    if in_affine is None:                                # BN -> conv (folded)
        in_scale = jnp.ones((C,), jnp.float32)
        in_shift = jnp.zeros((C,), jnp.float32)
    else:
        in_scale, in_shift = in_affine
    return _conv2d_jit(x, wmat, out_scale, out_shift, in_scale, in_shift,
                       k=k, act=act)


def apply_linear(x_blc, lin, act="none"):
    Bn, L, C = x_blc.shape
    cout = lin["w"].shape[1]
    shift = lin["b"] if lin["b"] is not None else jnp.zeros((cout,), jnp.float32)
    y = _matmul_jit(x_blc.reshape(Bn * L, C), lin["w"],
                    jnp.ones((cout,), jnp.float32), shift, act=act)
    return y.reshape(Bn, L, cout)


def dtbc_projection(cond_blc, dt_proj, B_proj, C_proj):
    """Fused dt/B/C projection (one matmul); softplus applied to the dt slice."""
    d_model = dt_proj["w"].shape[1]
    d_state = B_proj["w"].shape[1]
    Wc = jnp.concatenate([dt_proj["w"], B_proj["w"], C_proj["w"]], axis=1)
    bc = jnp.concatenate([dt_proj["b"], jnp.zeros((2 * d_state,), jnp.float32)])
    Bn, L, Cin = cond_blc.shape
    y = _matmul_jit(cond_blc.reshape(Bn * L, Cin), Wc,
                    jnp.ones((Wc.shape[1],), jnp.float32), bc, act="none")
    y = y.reshape(Bn, L, d_model + 2 * d_state)
    dt = jax.nn.softplus(y[..., :d_model])
    Bm = y[..., d_model:d_model + d_state]
    Cm = y[..., d_model + d_state:]
    return dt, Bm, Cm


def _pair_param(pF, pR, Bn):
    return jnp.concatenate(
        [jnp.broadcast_to(pF[None], (Bn,) + pF.shape),
         jnp.broadcast_to(pR[None], (Bn,) + pR.shape)], axis=0)


def upsample2(x):
    # TODO(synk): cus_sample not in reference source; nearest-neighbor x2 assumed.
    return jnp.repeat(jnp.repeat(x, 2, axis=1), 2, axis=2)


# ---------------------------------------------------------------------------
# S6 / CMS6 stand-ins (selective SSM; Pallas scan kernel inside)
# ---------------------------------------------------------------------------
def _ssm_A(d_model, d_state):
    return -jnp.tile(jnp.arange(1, d_state + 1, dtype=jnp.float32)[None, :],
                     (d_model, 1))


def init_s6(kg, d_in, d_model, d_state):
    return {"in_proj": init_linear(kg, d_in, d_model),
            "dt_proj": init_linear(kg, d_model, d_model),
            "B_proj": init_linear(kg, d_model, d_state, bias=False),
            "C_proj": init_linear(kg, d_model, d_state, bias=False),
            "A": _ssm_A(d_model, d_state),
            "D": jnp.ones((d_model,), jnp.float32)}


def init_cms6(kg, d_model, d_state):
    d_cond = 2 * d_model
    return {"dt_proj": init_linear(kg, d_cond, d_model),
            "B_proj": init_linear(kg, d_cond, d_state, bias=False),
            "C_proj": init_linear(kg, d_cond, d_state, bias=False),
            "A": _ssm_A(d_model, d_state),
            "D": jnp.ones((d_model,), jnp.float32)}


# ---------------------------------------------------------------------------
# SSNet building blocks
# ---------------------------------------------------------------------------
def init_cbr(kg, cin, cout, k=3):
    return {"conv": init_conv(kg, cin, cout, k, bias=False), "bn": init_bn(cout)}


def cbr_forward(p, x, in_affine=None):
    return conv2d(x, p["conv"], bn=p["bn"], act="relu", in_affine=in_affine)


def init_convffn(kg, dim, out_dim, expand):
    return {"cbr": init_cbr(kg, dim, dim * expand, 3),
            "proj": init_conv(kg, dim * expand, out_dim, 1, bias=True)}


def convffn_forward(p, x, in_affine=None):
    return conv2d(cbr_forward(p["cbr"], x, in_affine=in_affine), p["proj"])


def init_cbam(kg, dim, reduction=16):
    hidden = max(dim // reduction, 1)
    return {"fc1": init_conv(kg, dim, hidden, 1, bias=False),
            "fc2": init_conv(kg, hidden, dim, 1, bias=False),
            "spatial": init_conv(kg, 2, 1, 7, bias=False)}


def cbam_forward(p, x):
    # TODO(synk): CBAM not in reference source; canonical channel+spatial attention used.
    w1 = p["fc1"]["w"][:, :, 0, 0]            # (hidden, C)
    w2 = p["fc2"]["w"][:, :, 0, 0]            # (C, hidden)
    avg = jnp.mean(x, axis=(1, 2))            # (B, C)
    mx = jnp.max(x, axis=(1, 2))

    def mlp(v):                               # tiny (B, C) MLP -> plain XLA
        return jnp.maximum(v @ w1.T, 0.0) @ w2.T

    ch = jax.nn.sigmoid(mlp(avg) + mlp(mx))[:, None, None, :]
    x = x * ch
    avg_c = jnp.mean(x, axis=-1, keepdims=True)
    max_c = jnp.max(x, axis=-1, keepdims=True)
    sp = jax.nn.sigmoid(conv2d(jnp.concatenate([avg_c, max_c], axis=-1),
                               p["spatial"]))
    return x * sp


def init_smfb(kg, dim, d_state=64):
    return {"to_x": init_conv(kg, dim, dim, 1, True),
            "mambaF": init_s6(kg, dim, dim // 2, d_state),
            "mambaR": init_s6(kg, dim, dim // 2, d_state),
            "proj": init_conv(kg, dim, dim, 1, True)}


def smfb_forward(p, x, in_affine=None):
    Bn, H, W, C = x.shape
    L = H * W
    x = conv2d(x, p["to_x"], in_affine=in_affine)
    x_blc = x.reshape(Bn, L, C)
    xF = x_blc
    xR = jnp.flip(x_blc, axis=1)
    uF = apply_linear(xF, p["mambaF"]["in_proj"])
    uR = apply_linear(xR, p["mambaR"]["in_proj"])
    dtF, BF, CF = dtbc_projection(uF, p["mambaF"]["dt_proj"],
                                  p["mambaF"]["B_proj"], p["mambaF"]["C_proj"])
    dtR, BR, CR = dtbc_projection(uR, p["mambaR"]["dt_proj"],
                                  p["mambaR"]["B_proj"], p["mambaR"]["C_proj"])
    # Both scan directions merged along batch into one pallas_call.
    u = jnp.concatenate([uF, uR], axis=0)
    dt = jnp.concatenate([dtF, dtR], axis=0)
    Bm = jnp.concatenate([BF, BR], axis=0)
    Cm = jnp.concatenate([CF, CR], axis=0)
    A_b = _pair_param(p["mambaF"]["A"], p["mambaR"]["A"], Bn)
    D_b = _pair_param(p["mambaF"]["D"], p["mambaR"]["D"], Bn)
    y = _ssm_apply_jit(dt, u, Bm, Cm, A_b, D_b)            # (2B, C//2, L)
    yc = jnp.concatenate([y[:Bn], jnp.flip(y[Bn:], axis=-1)], axis=1)  # (B,C,L)
    yc = jnp.transpose(yc, (0, 2, 1)).reshape(Bn, H, W, C)
    return conv2d(yc, p["proj"])


def init_cmfb(kg, dim, d_state=64):
    return {"to_x": init_conv(kg, dim, dim // 2, 1, True),
            "to_y": init_conv(kg, dim, dim, 1, True),
            "mambaF": init_cms6(kg, dim // 2, d_state),
            "mambaR": init_cms6(kg, dim // 2, d_state),
            "proj": init_conv(kg, dim, dim, 1, True)}


def cmfb_forward(p, x, y, in_affine_x=None, in_affine_y=None):
    Bn, H, W, C = x.shape
    L = H * W
    xh = conv2d(x, p["to_x"], in_affine=in_affine_x)       # (B,H,W,C//2)
    yh = conv2d(y, p["to_y"], in_affine=in_affine_y)       # (B,H,W,C)
    x_blc = xh.reshape(Bn, L, C // 2)
    y_blc = yh.reshape(Bn, L, C)
    xF, xR = x_blc, jnp.flip(x_blc, axis=1)
    yF, yR = y_blc, jnp.flip(y_blc, axis=1)
    dtF, BF, CF = dtbc_projection(yF, p["mambaF"]["dt_proj"],
                                  p["mambaF"]["B_proj"], p["mambaF"]["C_proj"])
    dtR, BR, CR = dtbc_projection(yR, p["mambaR"]["dt_proj"],
                                  p["mambaR"]["B_proj"], p["mambaR"]["C_proj"])
    u = jnp.concatenate([xF, xR], axis=0)
    dt = jnp.concatenate([dtF, dtR], axis=0)
    Bm = jnp.concatenate([BF, BR], axis=0)
    Cm = jnp.concatenate([CF, CR], axis=0)
    A_b = _pair_param(p["mambaF"]["A"], p["mambaR"]["A"], Bn)
    D_b = _pair_param(p["mambaF"]["D"], p["mambaR"]["D"], Bn)
    o = _ssm_apply_jit(dt, u, Bm, Cm, A_b, D_b)            # (2B, C//2, L)
    oc = jnp.concatenate([o[:Bn], jnp.flip(o[Bn:], axis=-1)], axis=1)  # (B,C,L)
    oc = jnp.transpose(oc, (0, 2, 1)).reshape(Bn, H, W, C)
    return conv2d(oc, p["proj"])


def init_smdb(kg, dim, d_state, ffn_expand):
    return {"norm1": init_bn(dim), "smfb": init_smfb(kg, dim, d_state),
            "cbam": init_cbam(kg, dim), "norm2": init_bn(dim),
            "ffn": init_convffn(kg, dim, dim, ffn_expand)}


def smdb_forward(p, x1):
    x = x1 + smfb_forward(p["smfb"], x1, in_affine=bn_affine(p["norm1"]))
    x = cbam_forward(p["cbam"], x)
    return x + convffn_forward(p["ffn"], x, in_affine=bn_affine(p["norm2"]))


def init_cmdb(kg, dim, d_state, ffn_expand):
    return {"rgb_norm2": init_bn(dim), "depth_norm2": init_bn(dim),
            "depth_to_rgb": init_cmfb(kg, dim, d_state),
            "rgb_to_depth": init_cmfb(kg, dim, d_state),
            "cbam1": init_cbam(kg, dim), "cbam2": init_cbam(kg, dim),
            "norm3": init_bn(2 * dim),
            "ffn": init_convffn(kg, 2 * dim, 2 * dim, ffn_expand)}


def cmdb_forward(p, rgb, depth):
    rgb_aff = bn_affine(p["rgb_norm2"])
    depth_aff = bn_affine(p["depth_norm2"])
    rgb_rgbd = cbam_forward(
        p["cbam1"],
        rgb + cmfb_forward(p["depth_to_rgb"], rgb, depth,
                           in_affine_x=rgb_aff, in_affine_y=depth_aff))
    depth_rgbd = cbam_forward(
        p["cbam2"],
        depth + cmfb_forward(p["rgb_to_depth"], depth, rgb,
                             in_affine_x=depth_aff, in_affine_y=rgb_aff))
    rgbd = jnp.concatenate([rgb_rgbd, depth_rgbd], axis=-1)
    return rgbd + convffn_forward(p["ffn"], rgbd, in_affine=bn_affine(p["norm3"]))


def init_m2db(kg, in_dim, embed, ffn_expand):
    return {"rgb_cnn_proj": {"cbr": init_cbr(kg, in_dim, embed, 3),
                             "proj": init_conv(kg, embed, embed, 1, True)},
            "depth_cnn_proj": {"cbr": init_cbr(kg, in_dim, embed, 3),
                               "proj": init_conv(kg, embed, embed, 1, True)},
            "rgb_smdb": init_smdb(kg, embed, 64, ffn_expand),
            "depth_smdb": init_smdb(kg, embed, 64, ffn_expand),
            "cmdb": init_cmdb(kg, embed, 64, ffn_expand),
            "smdb": init_smdb(kg, 2 * embed, 64, ffn_expand)}


def cnn_proj_forward(p, x):
    return conv2d(cbr_forward(p["cbr"], x), p["proj"])


def m2db_forward(p, rgb, depth, previous=None):
    rgb = cnn_proj_forward(p["rgb_cnn_proj"], rgb)
    depth = cnn_proj_forward(p["depth_cnn_proj"], depth)
    rgb = smdb_forward(p["rgb_smdb"], rgb)
    depth = smdb_forward(p["depth_smdb"], depth)
    rgbd = cmdb_forward(p["cmdb"], rgb, depth)
    if previous is not None:
        rgbd = rgbd + previous
    return smdb_forward(p["smdb"], rgbd)


def init_ssnet(kg, embed_dim=16):
    cs = (256, 512, 1024, 2048)
    return {"m2dm": [init_m2db(kg, c, embed_dim, 1) for c in cs],
            "recon0": init_cbr(kg, embed_dim * 2, embed_dim, 3),
            "recon1": init_cbr(kg, embed_dim, 32, 3),
            "recon2": init_conv(kg, 32, 1, 1, True)}


def ssnet_forward(p, rgb_feats, depth_feats):
    x = m2db_forward(p["m2dm"][3], rgb_feats[3], depth_feats[3])
    x = m2db_forward(p["m2dm"][2], rgb_feats[2], depth_feats[2], previous=upsample2(x))
    x = m2db_forward(p["m2dm"][1], rgb_feats[1], depth_feats[1], previous=upsample2(x))
    x = m2db_forward(p["m2dm"][0], rgb_feats[0], depth_feats[0], previous=upsample2(x))
    x = cbr_forward(p["recon0"], upsample2(x))
    x = cbr_forward(p["recon1"], upsample2(x))
    return conv2d(x, p["recon2"])


if __name__ == "__main__":
    B, H, W = 2, 64, 64
    embed_dim = 16
    cs = (256, 512, 1024, 2048)

    kg = KeyGen(0)
    params = init_ssnet(kg, embed_dim)

    feat_keys = jax.random.split(jax.random.PRNGKey(0), 8)
    rgb_feats, depth_feats = [], []
    for i, c in enumerate(cs):
        h = H // (4 * (2 ** i))
        rgb_feats.append(jax.random.normal(feat_keys[i], (B, h, h, c), jnp.float32))
        depth_feats.append(jax.random.normal(feat_keys[4 + i], (B, h, h, c), jnp.float32))

    out = ssnet_forward(params, rgb_feats, depth_feats)
    out = jax.block_until_ready(out)
    assert out.shape == (B, H, W, 1), out.shape   # NHWC == torch (B,1,H,W)
    print("KERNEL_OK")
</pallas_src>

<mosaic_0001>
module attributes {stable_mosaic.version = 11 : i64} {
  func.func @_mm_kernel(%arg0: i32, %arg1: i32, %arg2: i32, %arg3: memref<8x512xbf16, #tpu.memory_space<vmem>>, %arg4: memref<512x128xbf16, #tpu.memory_space<vmem>>, %arg5: memref<1x128xf32, #tpu.memory_space<vmem>>, %arg6: memref<1x128xf32, #tpu.memory_space<vmem>>, %arg7: memref<8x128xf32, #tpu.memory_space<vmem>>, %arg8: memref<8x128xf32, #tpu.memory_space<vmem>>) attributes {dimension_semantics = [#tpu.dimension_semantics<parallel>, #tpu.dimension_semantics<parallel>, #tpu.dimension_semantics<arbitrary>], iteration_bounds = array<i64: 1, 1, 36>, scalar_prefetch = 0 : i64, scratch_operands = 1 : i64, tpu.core_type = #tpu.core_type<tc>, window_params = [{transform_indices = @transform_0, window_bounds = array<i64: 8, 512>}, {transform_indices = @transform_1, window_bounds = array<i64: 512, 128>}, {transform_indices = @transform_2, window_bounds = array<i64: 1, 128>}, {transform_indices = @transform_3, window_bounds = array<i64: 1, 128>}, {transform_indices = @transform_4, window_bounds = array<i64: 8, 128>}]} {
    %c0_i32 = arith.constant 0 : i32
    %0 = arith.cmpi eq, %arg2, %c0_i32 : i32
    %1 = arith.extui %0 : i1 to i32
    %c0_i32_0 = arith.constant 0 : i32
    %2 = arith.cmpi ne, %1, %c0_i32_0 : i32
    scf.if %2 {
      %cst_9 = arith.constant 0.000000e+00 : f32
      %12 = vector.broadcast %cst_9 : f32 to vector<8x128xf32>
      %c0_10 = arith.constant 0 : index
      %c0_11 = arith.constant 0 : index
      %13 = vector.load %arg8[%c0_10, %c0_11] : memref<8x128xf32, #tpu.memory_space<vmem>>, vector<8x128xf32>
      tpu.vector_store %arg8[%c0_10, %c0_11], %12 {strides = array<i32>} : memref<8x128xf32, #tpu.memory_space<vmem>>, vector<8x128xf32>,
    } else {
    }
    %c0 = arith.constant 0 : index
    %c0_1 = arith.constant 0 : index
    %3 = vector.load %arg8[%c0, %c0_1] : memref<8x128xf32, #tpu.memory_space<vmem>>, vector<8x128xf32>
    %c0_2 = arith.constant 0 : index
    %c0_3 = arith.constant 0 : index
    %4 = vector.load %arg3[%c0_2, %c0_3] : memref<8x512xbf16, #tpu.memory_space<vmem>>, vector<8x512xbf16>
    %c0_4 = arith.constant 0 : index
    %c0_5 = arith.constant 0 : index
    %5 = vector.load %arg4[%c0_4, %c0_5] : memref<512x128xbf16, #tpu.memory_space<vmem>>, vector<512x128xbf16>
    %cst = arith.constant dense<0.000000e+00> : vector<8x128xf32>
    %6 = tpu.matmul %4, %5, %cst {dimension_numbers = #tpu.dot_dimension_numbers<[1], [0], [0], [1], [0, 0, 1, 1], [], []>} : vector<8x512xbf16>, vector<512x128xbf16>, vector<8x128xf32> -> vector<8x128xf32>
    %7 = arith.addf %3, %6 : vector<8x128xf32>
    %c0_6 = arith.constant 0 : index
    %c0_7 = arith.constant 0 : index
    %8 = vector.load %arg8[%c0_6, %c0_7] : memref<8x128xf32, #tpu.memory_space<vmem>>, vector<8x128xf32>
    tpu.vector_store %arg8[%c0_6, %c0_7], %7 {strides = array<i32>} : memref<8x128xf32, #tpu.memory_space<vmem>>, vector<8x128xf32>,
    %c35_i32 = arith.constant 35 : i32
    %9 = arith.cmpi eq, %arg2, %c35_i32 : i32
    %10 = arith.extui %9 : i1 to i32
    %c0_i32_8 = arith.constant 0 : i32
    %11 = arith.cmpi ne, %10, %c0_i32_8 : i32
    scf.if %11 {
      %c0_9 = arith.constant 0 : index
      %c0_10 = arith.constant 0 : index
      %12 = vector.load %arg8[%c0_9, %c0_10] : memref<8x128xf32, #tpu.memory_space<vmem>>, vector<8x128xf32>
      %c0_11 = arith.constant 0 : index
      %c0_12 = arith.constant 0 : index
      %13 = vector.load %arg5[%c0_11, %c0_12] : memref<1x128xf32, #tpu.memory_space<vmem>>, vector<1x128xf32>
      %14 = vector.broadcast %13 : vector<1x128xf32> to vector<8x128xf32>
      %15 = arith.mulf %12, %14 : vector<8x128xf32>
      %c0_13 = arith.constant 0 : index
      %c0_14 = arith.constant 0 : index
      %16 = vector.load %arg6[%c0_13, %c0_14] : memref<1x128xf32, #tpu.memory_space<vmem>>, vector<1x128xf32>
      %17 = vector.broadcast %16 : vector<1x128xf32> to vector<8x128xf32>
      %18 = arith.addf %15, %17 : vector<8x128xf32>
      %cst_15 = arith.constant 0.000000e+00 : f32
      %19 = vector.broadcast %cst_15 : f32 to vector<8x128xf32>
      %20 = arith.maximumf %18, %19 : vector<8x128xf32>
      %c0_16 = arith.constant 0 : index
      %c0_17 = arith.constant 0 : index
      %21 = vector.load %arg7[%c0_16, %c0_17] : memref<8x128xf32, #tpu.memory_space<vmem>>, vector<8x128xf32>
      tpu.vector_store %arg7[%c0_16, %c0_17], %20 {strides = array<i32>} : memref<8x128xf32, #tpu.memory_space<vmem>>, vector<8x128xf32>,
    } else {
    }
    return
  }
  func.func @transform_0(%arg0: i32, %arg1: i32, %arg2: i32) -> (i32, i32) {
    %c0_i32 = arith.constant 0 : i32
    return %arg0, %arg2 : i32, i32
  }
  func.func @transform_1(%arg0: i32, %arg1: i32, %arg2: i32) -> (i32, i32) {
    %c0_i32 = arith.constant 0 : i32
    return %arg2, %arg1 : i32, i32
  }
  func.func @transform_2(%arg0: i32, %arg1: i32, %arg2: i32) -> (i32, i32) {
    %c0_i32 = arith.constant 0 : i32
    %c0_i32_0 = arith.constant 0 : i32
    return %c0_i32, %arg1 : i32, i32
  }
  func.func @transform_3(%arg0: i32, %arg1: i32, %arg2: i32) -> (i32, i32) {
    %c0_i32 = arith.constant 0 : i32
    %c0_i32_0 = arith.constant 0 : i32
    return %c0_i32, %arg1 : i32, i32
  }
  func.func @transform_4(%arg0: i32, %arg1: i32, %arg2: i32) -> (i32, i32) {
    %c0_i32 = arith.constant 0 : i32
    return %arg0, %arg1 : i32, i32
  }
}

</mosaic_0001>

<llo_original>
// kernel: _conv2d_jit.1
$region0: #{_conv2d_jit.1}
  #allocation0 [shape = 'u32[]', space=smem, size = 0x4, offset = 0x4, fixed_abs, tag = 'smem constant byte address 0x4 - core index']
  #allocation1 [shape = 'u32[72,128]{1,0:T(1,128)}', space=vmem, size = 0x9000, scoped, tag = 'internal scratch']
  #allocation2 [shape = 'f32[8,128]{1,0:T(8,128)}', space=vmem, size = 0x1000, scoped, tag = 'scratch operand']
  %s0 = inlined_call_operand.vmem [shape: bf16[8,18432], index: 0, kind: input, shape index: {}]
  %s1 = inlined_call_operand.vmem [shape: bf16[18432,128], index: 1, kind: input, shape index: {}]
  %s2 = inlined_call_operand.vmem [shape: f32[1,128], index: 2, kind: input, shape index: {}]
  %s3 = inlined_call_operand.vmem [shape: f32[1,128], index: 3, kind: input, shape index: {}]
  %s4 = inlined_call_operand.hbm [shape: f32[8,128], index: 4, kind: output, shape index: {}]
  %s5 = sld [smem:[#allocation0]]
  $region57: #{_conv2d_jit.1} parent=0
    _
  %s7 = ssub.s32 1, %s5
  %s8 = scalar_select 0, %s7, %s5
  $region1: #{_conv2d_jit.1} parent=0
    #allocation3 [shape = 'u8[4096]{0}', space=vmem, size = 0x1000, scoped, tag = 'output window, operand 0, single buffered']
    #allocation4 [shape = 's32[2]{0}', space=sflag, size = 0x8, scoped, tag = 'scoped memory for _conv2d_jit.1']
    %9 = vsyncpa [#allocation4], 0
    loop: start=0, step=1, limit=38
    $region2: #{_conv2d_jit.1} parent=1 // loop_pre_header
      _
    $region3: #{_conv2d_jit.1} parent=1 // loop_header
      %s11 = sphi 0, %s15
      %p12 = scmp.ge.s32.totalorder %s11, 38
      %s18 = sphi 0, %s37
      %s19 = sphi 0, %s33
      %s20 = sphi 0, %s29
      %s21 = sphi 0, %s18
      %s22 = sphi 0, %s19
      %s23 = sphi 0, %s20
      %s24 = sphi 0, %s21
      %s25 = sphi 0, %s22
      %s26 = sphi 0, %s23
      %s42 = sphi 0, %s44
      %s45 = sphi 0, %s42
      %s46 = sphi 0, %s45
      %s62 = sphi 0, %s46
      %s70 = sphi 0, %s72
      %s73 = sphi 0, %s70
      %s74 = sphi 0, %s73
      %s90 = sphi 0, %s74
      %s96 = sphi 0, %s98
      %s99 = sphi 0, %s96
      %s100 = sphi 0, %s99
      %s116 = sphi 0, %s100
      %s122 = sphi 0, %s124
      %s125 = sphi 0, %s122
      %s126 = sphi 0, %s125
      %s142 = sphi 0, %s126
      %s150 = sphi 0, %s152
      %s153 = sphi 0, %s150
      %s154 = sphi 0, %s153
      %s170 = sphi 0, %s154
    $region4: #{_conv2d_jit.1} parent=1 // loop_header_branch
      %14 = sbr.rel (%p12) target = $region8
    $region5: #{_conv2d_jit.1} parent=1 // loop_body
      %s16 = ssub.s32 %s11, 1
      %s17 = ssub.s32 %s11, 2
      %s27 = sadd.s32 1, %s20
      %p28 = scmp.ge.s32.totalorder %s27, 36
      %s29 = scalar_select %p28, 0, %s27
      %s30 = sadd.s32 1, %s19
      %s31 = scalar_select %p28, %s30, %s19
      %p32 = scmp.ge.s32.totalorder %s31, 1
      %s33 = scalar_select %p32, 0, %s31
      %s34 = sadd.s32 1, %s18
      %s35 = scalar_select %p32, %s34, %s18
      %p36 = scmp.ge.s32.totalorder %s35, 1
      %s37 = scalar_select %p36, 0, %s35
      %s38 = ssub.s32 %s18, %s37
      %s39 = ssub.s32 %s20, %s29
      %s40 = sor.u32 %s38, %s39
      %p41 = scmp.eq.s32.totalorder %s40, 0
      %s43 = sadd.s32 %s42, 1
      %s44 = scalar_select %p41, %s42, %s43
      %p47 = pneg %p41
      %p48 = scmp.eq.s32.totalorder %s11, 35
      %p49 = por %p47, %p48
      %p50 = scmp.ne.s32.totalorder %s42, %s45
      %p51 = scmp.eq.s32.totalorder %s11, 0
      %p52 = por %p50, %p51
      %p53 = scmp.ne.s32.totalorder %s42, %s45
      %p54 = scmp.eq.s32.totalorder %s16, 35
      %p55 = por %p53, %p54
      %p56 = scmp.ne.s32.totalorder %s45, %s46
      %p57 = scmp.eq.s32.totalorder %s16, 0
      %p58 = por %p56, %p57
      %p59 = scmp.ne.s32.totalorder %s45, %s46
      %p60 = scmp.eq.s32.totalorder %s17, 35
      %p61 = por %p59, %p60
      %p63 = scmp.ne.s32.totalorder %s46, %s62
      %p64 = scmp.eq.s32.totalorder %s17, 0
      %p65 = por %p63, %p64
      %s66 = ssub.s32 %s20, %s29
      %s67 = ssub.s32 %s19, %s33
      %s68 = sor.u32 %s66, %s67
      %p69 = scmp.eq.s32.totalorder %s68, 0
      %s71 = sadd.s32 %s70, 1
      %s72 = scalar_select %p69, %s70, %s71
      %p75 = pneg %p69
      %p76 = scmp.eq.s32.totalorder %s11, 35
      %p77 = por %p75, %p76
      %p78 = scmp.ne.s32.totalorder %s70, %s73
      %p79 = scmp.eq.s32.totalorder %s11, 0
      %p80 = por %p78, %p79
      %p81 = scmp.ne.s32.totalorder %s70, %s73
      %p82 = scmp.eq.s32.totalorder %s16, 35
      %p83 = por %p81, %p82
      %p84 = scmp.ne.s32.totalorder %s73, %s74
      %p85 = scmp.eq.s32.totalorder %s16, 0
      %p86 = por %p84, %p85
      %p87 = scmp.ne.s32.totalorder %s73, %s74
      %p88 = scmp.eq.s32.totalorder %s17, 35
      %p89 = por %p87, %p88
      %p91 = scmp.ne.s32.totalorder %s74, %s90
      %p92 = scmp.eq.s32.totalorder %s17, 0
      %p93 = por %p91, %p92
      %s94 = ssub.s32 %s19, %s33
      %p95 = scmp.eq.s32.totalorder %s94, 0
      %s97 = sadd.s32 %s96, 1
      %s98 = scalar_select %p95, %s96, %s97
      %p101 = pneg %p95
      %p102 = scmp.eq.s32.totalorder %s11, 35
      %p103 = por %p101, %p102
      %p104 = scmp.ne.s32.totalorder %s96, %s99
      %p105 = scmp.eq.s32.totalorder %s11, 0
      %p106 = por %p104, %p105
      %p107 = scmp.ne.s32.totalorder %s96, %s99
      %p108 = scmp.eq.s32.totalorder %s16, 35
      %p109 = por %p107, %p108
      %p110 = scmp.ne.s32.totalorder %s99, %s100
      %p111 = scmp.eq.s32.totalorder %s16, 0
      %p112 = por %p110, %p111
      %p113 = scmp.ne.s32.totalorder %s99, %s100
      %p114 = scmp.eq.s32.totalorder %s17, 35
      %p115 = por %p113, %p114
      %p117 = scmp.ne.s32.totalorder %s100, %s116
      %p118 = scmp.eq.s32.totalorder %s17, 0
      %p119 = por %p117, %p118
      %s120 = ssub.s32 %s19, %s33
      %p121 = scmp.eq.s32.totalorder %s120, 0
      %s123 = sadd.s32 %s122, 1
      %s124 = scalar_select %p121, %s122, %s123
      %p127 = pneg %p121
      %p128 = scmp.eq.s32.totalorder %s11, 35
      %p129 = por %p127, %p128
      %p130 = scmp.ne.s32.totalorder %s122, %s125
      %p131 = scmp.eq.s32.totalorder %s11, 0
      %p132 = por %p130, %p131
      %p133 = scmp.ne.s32.totalorder %s122, %s125
      %p134 = scmp.eq.s32.totalorder %s16, 35
      %p135 = por %p133, %p134
      %p136 = scmp.ne.s32.totalorder %s125, %s126
      %p137 = scmp.eq.s32.totalorder %s16, 0
      %p138 = por %p136, %p137
      %p139 = scmp.ne.s32.totalorder %s125, %s126
      %p140 = scmp.eq.s32.totalorder %s17, 35
      %p141 = por %p139, %p140
      %p143 = scmp.ne.s32.totalorder %s126, %s142
      %p144 = scmp.eq.s32.totalorder %s17, 0
      %p145 = por %p143, %p144
      %s146 = ssub.s32 %s18, %s37
      %s147 = ssub.s32 %s19, %s33
      %s148 = sor.u32 %s146, %s147
      %p149 = scmp.eq.s32.totalorder %s148, 0
      %s151 = sadd.s32 %s150, 1
      %s152 = scalar_select %p149, %s150, %s151
      %p155 = pneg %p149
      %p156 = scmp.eq.s32.totalorder %s11, 35
      %p157 = por %p155, %p156
      %p158 = scmp.ne.s32.totalorder %s150, %s153
      %p159 = scmp.eq.s32.totalorder %s11, 0
      %p160 = por %p158, %p159
      %p161 = scmp.ne.s32.totalorder %s150, %s153
      %p162 = scmp.eq.s32.totalorder %s16, 35
      %p163 = por %p161, %p162
      %p164 = scmp.ne.s32.totalorder %s153, %s154
      %p165 = scmp.eq.s32.totalorder %s16, 0
      %p166 = por %p164, %p165
      %p167 = scmp.ne.s32.totalorder %s153, %s154
      %p168 = scmp.eq.s32.totalorder %s17, 35
      %p169 = por %p167, %p168
      %p171 = scmp.ne.s32.totalorder %s154, %s170
      %p172 = scmp.eq.s32.totalorder %s17, 0
      %p173 = por %p171, %p172
      %p174 = scmp.le.s32.totalorder 1, %s11
      %p175 = scmp.lt.s32.totalorder %s11, 37
      %p176 = pnand %p174, %p175
      %p177 = pneg %p176
      // Predicated region
      $region9: #{_conv2d_jit.1} parent=5 // pred_check
        _
      $region10: #{_conv2d_jit.1} parent=5 // pred_check_branch
        %179 = sbr.rel (%p176) target = $region12
      $region11: #{_conv2d_jit.1} parent=5 // pred_region
        %s180 = ssub.s32 %s11, 1
        // Predicated region
        $region13: #{_conv2d_jit.1} parent=11 // pred_check
          %p181 = pneg %p112
        $region14: #{_conv2d_jit.1} parent=11 // pred_check_branch
          %183 = sbr.rel (%p181) target = $region16
        $region15: #{_conv2d_jit.1} parent=11 // pred_region
          %p184 = scmp.lt.s32.totalorder %s22, 0
          %s185 = scalar_select %p184, %s22, 0
          %s186 = scalar_lea.vmem %s2, %s185
        $region16: #{_conv2d_jit.1} parent=11 // pred_fallthru
          _
        // Predicated region
        $region17: #{_conv2d_jit.1} parent=11 // pred_check
          %p187 = pneg %p138
        $region18: #{_conv2d_jit.1} parent=11 // pred_check_branch
          %189 = sbr.rel (%p187) target = $region20
        $region19: #{_conv2d_jit.1} parent=11 // pred_region
          %p190 = scmp.lt.s32.totalorder %s22, 0
          %s191 = scalar_select %p190, %s22, 0
          %s192 = scalar_lea.vmem %s3, %s191
        $region20: #{_conv2d_jit.1} parent=11 // pred_fallthru
          _
      $region12: #{_conv2d_jit.1} parent=5 // pred_fallthru
        _
      %p193 = scmp.lt.s32.totalorder %s11, 36
      // Predicated region
      $region21: #{_conv2d_jit.1} parent=5 // pred_check
        %p194 = pneg %p193
      $region22: #{_conv2d_jit.1} parent=5 // pred_check_branch
        %196 = sbr.rel (%p194) target = $region24
      $region23: #{_conv2d_jit.1} parent=5 // pred_region
        // Predicated region
        $region25: #{_conv2d_jit.1} parent=23 // pred_check
          %p197 = pneg %p52
        $region26: #{_conv2d_jit.1} parent=23 // pred_check_branch
          %199 = sbr.rel (%p197) target = $region28
        $region27: #{_conv2d_jit.1} parent=23 // pred_region
          %s200 = smul.u32 4, %s20
          %p201 = scmp.lt.s32.totalorder %s18, 0
          %s202 = scalar_select %p201, %s18, 0
          %p203 = scmp.lt.s32.totalorder %s200, 143
          %s204 = scalar_select %p203, %s200, 143
          %s205 = smul.addr %s202, 144
          %s206 = sadd.s32 %s204, %s205
          %s207 = smul.addr %s206, 4
          %s208 = scalar_lea.vmem %s0, %s207
          %s209 = smul.u32 4, %s20
        $region28: #{_conv2d_jit.1} parent=23 // pred_fallthru
          _
        // Predicated region
        $region29: #{_conv2d_jit.1} parent=23 // pred_check
          %p210 = pneg %p80
        $region30: #{_conv2d_jit.1} parent=23 // pred_check_branch
          %212 = sbr.rel (%p210) target = $region32
        $region31: #{_conv2d_jit.1} parent=23 // pred_region
          %s213 = smul.u32 64, %s20
          %p214 = scmp.lt.s32.totalorder %s213, 2303
          %s215 = scalar_select %p214, %s213, 2303
          %p216 = scmp.lt.s32.totalorder %s19, 0
          %s217 = scalar_select %p216, %s19, 0
          %s218 = sadd.s32 %s217, %s215
          %s219 = smul.addr %s218, 4
          %s220 = scalar_lea.vmem %s1, %s219
          %s221 = smul.u32 64, %s20
        $region32: #{_conv2d_jit.1} parent=23 // pred_fallthru
          _
      $region24: #{_conv2d_jit.1} parent=5 // pred_fallthru
        _
      %p222 = scmp.le.s32.totalorder 1, %s11
      %p223 = scmp.lt.s32.totalorder %s11, 37
      %p224 = pnand %p222, %p223
      %p225 = pneg %p224
      // Predicated region
      $region33: #{_conv2d_jit.1} parent=5 // pred_check
        _
      $region34: #{_conv2d_jit.1} parent=5 // pred_check_branch
        %227 = sbr.rel (%p224) target = $region36
      $region35: #{_conv2d_jit.1} parent=5 // pred_region
        %s228 = ssub.s32 %s11, 1
        %s229 = smul.u32 4, %s23
        %p230 = scmp.lt.s32.totalorder %s21, 0
        %s231 = scalar_select %p230, %s21, 0
        %p232 = scmp.lt.s32.totalorder %s229, 143
        %s233 = scalar_select %p232, %s229, 143
        %s234 = smul.addr %s231, 144
        %s235 = sadd.s32 %s233, %s234
        %s236 = smul.addr %s235, 4
        %s237 = scalar_lea.vmem %s0, %s236
        %p238 = pneg %p58
        %p239 = pneg %p55
        %s240 = smul.u32 64, %s23
        %p241 = scmp.lt.s32.totalorder %s240, 2303
        %s242 = scalar_select %p241, %s240, 2303
        %p243 = scmp.lt.s32.totalorder %s22, 0
        %s244 = scalar_select %p243, %s22, 0
        %s245 = sadd.s32 %s244, %s242
        %s246 = smul.addr %s245, 4
        %s247 = scalar_lea.vmem %s1, %s246
        %p248 = pneg %p86
        %p249 = pneg %p83
        %p250 = scmp.lt.s32.totalorder %s22, 0
        %s251 = scalar_select %p250, %s22, 0
        %s252 = scalar_lea.vmem %s2, %s251
        %p253 = pneg %p112
        %p254 = pneg %p109
        %p255 = scmp.lt.s32.totalorder %s22, 0
        %s256 = scalar_select %p255, %s22, 0
        %s257 = scalar_lea.vmem %s3, %s256
        %p258 = pneg %p138
        %p259 = pneg %p135
        %p260 = pneg %p166
        %p261 = pneg %p163
        %s262 = smul.u32 4, %s23
        %p263 = scmp.lt.s32.totalorder %s21, 0
        %s264 = scalar_select %p263, %s21, 0
        %p265 = scmp.lt.s32.totalorder %s262, 143
        %s266 = scalar_select %p265, %s262, 143
        %s267 = smul.addr %s264, 144
        %s268 = sadd.s32 %s266, %s267
        %s269 = smul.addr %s268, 4
        %s270 = scalar_lea.vmem %s0, %s269
        %s271 = smul.u32 4, %s23
        %s272 = smul.u32 64, %s23
        %p273 = scmp.lt.s32.totalorder %s272, 2303
        %s274 = scalar_select %p273, %s272, 2303
        %p275 = scmp.lt.s32.totalorder %s22, 0
        %s276 = scalar_select %p275, %s22, 0
        %s277 = sadd.s32 %s276, %s274
        %s278 = smul.addr %s277, 4
        %s279 = scalar_lea.vmem %s1, %s278
        %s280 = smul.u32 64, %s23
        %p281 = scmp.lt.s32.totalorder %s22, 0
        %s282 = scalar_select %p281, %s22, 0
        %s283 = scalar_lea.vmem %s2, %s282
        %p284 = scmp.lt.s32.totalorder %s22, 0
        %s285 = scalar_select %p284, %s22, 0
        %s286 = scalar_lea.vmem %s3, %s285
        %p287 = scmp.eq.s32.totalorder %s23, 0
        // Predicated region
        $region37: #{_conv2d_jit.1} parent=35 // pred_check
          %p288 = pneg %p287
        $region38: #{_conv2d_jit.1} parent=35 // pred_check_branch
          %290 = sbr.rel (%p288) target = $region40
        $region39: #{_conv2d_jit.1} parent=35 // pred_region
          %291 = vst [vmem:[#allocation2] sm:$0xff] 0.0
        $region40: #{_conv2d_jit.1} parent=35 // pred_fallthru
          _
        %v292 = vld [vmem:[#allocation2] sm:$0xff]
        %v293 = vld [vmem:[%s270] sm:$0xff]
        %v294 = vld [vmem:[%s270 + $0x8] sm:$0xff]
        %v295 = vld [vmem:[%s279] sm:$0xf]
        %v296 = vld [vmem:[%s279 + $0x4] sm:$0xf]
        %v297 = vld [vmem:[%s279 + $0x8] sm:$0xf]
        %v298 = vld [vmem:[%s279 + $0xc] sm:$0xf]
        %v299 = vld [vmem:[%s279 + $0x10] sm:$0xf]
        %v300 = vld [vmem:[%s279 + $0x14] sm:$0xf]
        %v301 = vld [vmem:[%s279 + $0x18] sm:$0xf]
        %v302 = vld [vmem:[%s279 + $0x1c] sm:$0xf]
        %v303 = vld [vmem:[%s279 + $0x20] sm:$0xf]
        %v304 = vld [vmem:[%s279 + $0x24] sm:$0xf]
        %v305 = vld [vmem:[%s279 + $0x28] sm:$0xf]
        %v306 = vld [vmem:[%s279 + $0x2c] sm:$0xf]
        %v307 = vld [vmem:[%s279 + $0x30] sm:$0xf]
        %v308 = vld [vmem:[%s279 + $0x34] sm:$0xf]
        %v309 = vld [vmem:[%s279 + $0x38] sm:$0xf]
        %v310 = vld [vmem:[%s279 + $0x3c] sm:$0xf]
        %v311 = vld [vmem:[%s279 + $0x40] sm:$0xf]
        %v312 = vld [vmem:[%s279 + $0x44] sm:$0xf]
        %v313 = vld [vmem:[%s279 + $0x48] sm:$0xf]
        %v314 = vld [vmem:[%s279 + $0x4c] sm:$0xf]
        %v315 = vld [vmem:[%s279 + $0x50] sm:$0xf]
        %v316 = vld [vmem:[%s279 + $0x54] sm:$0xf]
        %v317 = vld [vmem:[%s279 + $0x58] sm:$0xf]
        %v318 = vld [vmem:[%s279 + $0x5c] sm:$0xf]
        %v319 = vld [vmem:[%s279 + $0x60] sm:$0xf]
        %v320 = vld [vmem:[%s279 + $0x64] sm:$0xf]
        %v321 = vld [vmem:[%s279 + $0x68] sm:$0xf]
        %v322 = vld [vmem:[%s279 + $0x6c] sm:$0xf]
        %v323 = vld [vmem:[%s279 + $0x70] sm:$0xf]
        %v324 = vld [vmem:[%s279 + $0x74] sm:$0xf]
        %v325 = vld [vmem:[%s279 + $0x78] sm:$0xf]
        %v326 = vld [vmem:[%s279 + $0x7c] sm:$0xf]
        %v327 = vld [vmem:[%s279 + $0x80] sm:$0xf]
        %v328 = vld [vmem:[%s279 + $0x84] sm:$0xf]
        %v329 = vld [vmem:[%s279 + $0x88] sm:$0xf]
        %v330 = vld [vmem:[%s279 + $0x8c] sm:$0xf]
        %v331 = vld [vmem:[%s279 + $0x90] sm:$0xf]
        %v332 = vld [vmem:[%s279 + $0x94] sm:$0xf]
        %v333 = vld [vmem:[%s279 + $0x98] sm:$0xf]
        %v334 = vld [vmem:[%s279 + $0x9c] sm:$0xf]
        %v335 = vld [vmem:[%s279 + $0xa0] sm:$0xf]
        %v336 = vld [vmem:[%s279 + $0xa4] sm:$0xf]
        %v337 = vld [vmem:[%s279 + $0xa8] sm:$0xf]
        %v338 = vld [vmem:[%s279 + $0xac] sm:$0xf]
        %v339 = vld [vmem:[%s279 + $0xb0] sm:$0xf]
        %v340 = vld [vmem:[%s279 + $0xb4] sm:$0xf]
        %v341 = vld [vmem:[%s279 + $0xb8] sm:$0xf]
        %v342 = vld [vmem:[%s279 + $0xbc] sm:$0xf]
        %v343 = vld [vmem:[%s279 + $0xc0] sm:$0xf]
        %v344 = vld [vmem:[%s279 + $0xc4] sm:$0xf]
        %v345 = vld [vmem:[%s279 + $0xc8] sm:$0xf]
        %v346 = vld [vmem:[%s279 + $0xcc] sm:$0xf]
        %v347 = vld [vmem:[%s279 + $0xd0] sm:$0xf]
        %v348 = vld [vmem:[%s279 + $0xd4] sm:$0xf]
        %v349 = vld [vmem:[%s279 + $0xd8] sm:$0xf]
        %v350 = vld [vmem:[%s279 + $0xdc] sm:$0xf]
        %v351 = vld [vmem:[%s279 + $0xe0] sm:$0xf]
        %v352 = vld [vmem:[%s279 + $0xe4] sm:$0xf]
        %v353 = vld [vmem:[%s279 + $0xe8] sm:$0xf]
        %v354 = vld [vmem:[%s279 + $0xec] sm:$0xf]
        %v355 = vld [vmem:[%s279 + $0xf0] sm:$0xf]
        %v356 = vld [vmem:[%s279 + $0xf4] sm:$0xf]
        %v357 = vld [vmem:[%s279 + $0xf8] sm:$0xf]
        %v358 = vld [vmem:[%s279 + $0xfc] sm:$0xf]
        %v361 = vunpack.c.l.b16 %v293
        %v362 = vunpack.c.h.b16 %v293
        %v363 = vunpack.c.l.b16 %v294
        %v364 = vunpack.c.h.b16 %v294
        %v365 = vpack.c.b16 %v361, %v361
        %v366 = vpack.c.b16 %v362, %v362
        %v367 = vpack.c.b16 %v363, %v363
        %v368 = vpack.c.b16 %v364, %v364
        %v437 = vunpack.c.l.b16 %v295
        %v438 = vunpack.c.l.b16 %v296
        %v439 = vunpack.c.l.b16 %v297
        %v440 = vunpack.c.l.b16 %v298
        %v441 = vunpack.c.l.b16 %v299
        %v442 = vunpack.c.l.b16 %v300
        %v443 = vunpack.c.l.b16 %v301
        %v444 = vunpack.c.l.b16 %v302
        %v445 = vunpack.c.l.b16 %v303
        %v446 = vunpack.c.l.b16 %v304
        %v447 = vunpack.c.l.b16 %v305
        %v448 = vunpack.c.l.b16 %v306
        %v449 = vunpack.c.l.b16 %v307
        %v450 = vunpack.c.l.b16 %v308
        %v451 = vunpack.c.l.b16 %v309
        %v452 = vunpack.c.l.b16 %v310
        %v453 = vunpack.c.l.b16 %v311
        %v454 = vunpack.c.l.b16 %v312
        %v455 = vunpack.c.l.b16 %v313
        %v456 = vunpack.c.l.b16 %v314
        %v457 = vunpack.c.l.b16 %v315
        %v458 = vunpack.c.l.b16 %v316
        %v459 = vunpack.c.l.b16 %v317
        %v460 = vunpack.c.l.b16 %v318
        %v461 = vunpack.c.l.b16 %v319
        %v462 = vunpack.c.l.b16 %v320
        %v463 = vunpack.c.l.b16 %v321
        %v464 = vunpack.c.l.b16 %v322
        %v465 = vunpack.c.l.b16 %v323
        %v466 = vunpack.c.l.b16 %v324
        %v467 = vunpack.c.l.b16 %v325
        %v468 = vunpack.c.l.b16 %v326
        %v469 = vunpack.c.l.b16 %v327
        %v470 = vunpack.c.l.b16 %v328
        %v471 = vunpack.c.l.b16 %v329
        %v472 = vunpack.c.l.b16 %v330
        %v473 = vunpack.c.l.b16 %v331
        %v474 = vunpack.c.l.b16 %v332
        %v475 = vunpack.c.l.b16 %v333
        %v476 = vunpack.c.l.b16 %v334
        %v477 = vunpack.c.l.b16 %v335
        %v478 = vunpack.c.l.b16 %v336
        %v479 = vunpack.c.l.b16 %v337
        %v480 = vunpack.c.l.b16 %v338
        %v481 = vunpack.c.l.b16 %v339
        %v482 = vunpack.c.l.b16 %v340
        %v483 = vunpack.c.l.b16 %v341
        %v484 = vunpack.c.l.b16 %v342
        %v485 = vunpack.c.l.b16 %v343
        %v486 = vunpack.c.l.b16 %v344
        %v487 = vunpack.c.l.b16 %v345
        %v488 = vunpack.c.l.b16 %v346
        %v489 = vunpack.c.l.b16 %v347
        %v490 = vunpack.c.l.b16 %v348
        %v491 = vunpack.c.l.b16 %v349
        %v492 = vunpack.c.l.b16 %v350
        %v493 = vunpack.c.l.b16 %v351
        %v494 = vunpack.c.l.b16 %v352
        %v495 = vunpack.c.l.b16 %v353
        %v496 = vunpack.c.l.b16 %v354
        %v497 = vunpack.c.l.b16 %v355
        %v498 = vunpack.c.l.b16 %v356
        %v499 = vunpack.c.l.b16 %v357
        %v500 = vunpack.c.l.b16 %v358
        %v501 = vpack.c.b16 %v438, %v437
        %v502 = vpack.c.b16 %v440, %v439
        %v503 = vpack.c.b16 %v442, %v441
        %v504 = vpack.c.b16 %v444, %v443
        %v505 = vpack.c.b16 %v446, %v445
        %v506 = vpack.c.b16 %v448, %v447
        %v507 = vpack.c.b16 %v450, %v449
        %v508 = vpack.c.b16 %v452, %v451
        %v509 = vpack.c.b16 %v454, %v453
        %v510 = vpack.c.b16 %v456, %v455
        %v511 = vpack.c.b16 %v458, %v457
        %v512 = vpack.c.b16 %v460, %v459
        %v513 = vpack.c.b16 %v462, %v461
        %v514 = vpack.c.b16 %v464, %v463
        %v515 = vpack.c.b16 %v466, %v465
        %v516 = vpack.c.b16 %v468, %v467
        %v517 = vpack.c.b16 %v470, %v469
        %v518 = vpack.c.b16 %v472, %v471
        %v519 = vpack.c.b16 %v474, %v473
        %v520 = vpack.c.b16 %v476, %v475
        %v521 = vpack.c.b16 %v478, %v477
        %v522 = vpack.c.b16 %v480, %v479
        %v523 = vpack.c.b16 %v482, %v481
        %v524 = vpack.c.b16 %v484, %v483
        %v525 = vpack.c.b16 %v486, %v485
        %v526 = vpack.c.b16 %v488, %v487
        %v527 = vpack.c.b16 %v490, %v489
        %v528 = vpack.c.b16 %v492, %v491
        %v529 = vpack.c.b16 %v494, %v493
        %v530 = vpack.c.b16 %v496, %v495
        %v531 = vpack.c.b16 %v498, %v497
        %v532 = vpack.c.b16 %v500, %v499
        %565 = vmatpush.bf16.msra.mxu0 %v508
        %566 = vmatpush.bf16.msra.mxu0 %v507
        %567 = vmatpush.bf16.msra.mxu0 %v506
        %568 = vmatpush.bf16.msra.mxu0 %v505
        %569 = vmatpush.bf16.msra.mxu0 %v504
        %570 = vmatpush.bf16.msra.mxu0 %v503
        %571 = vmatpush.bf16.msra.mxu0 %v502
        %572 = vmatpush.bf16.msra.mxu0 %v501
        %573 = vmatmul.bf16.gmra.mxu0 %v365
        %v574 = vpop.f32.mrf.mxu0
        %v575 = vadd.f32 0.0, %v574
        %v576 = vpop.f32.mrf.mxu0
        %577 = vdwg.mxu0
        %578 = vmatpush.bf16.msra.mxu0 %v516
        %579 = vmatpush.bf16.msra.mxu0 %v515
        %580 = vmatpush.bf16.msra.mxu0 %v514
        %581 = vmatpush.bf16.msra.mxu0 %v513
        %582 = vmatpush.bf16.msra.mxu0 %v512
        %583 = vmatpush.bf16.msra.mxu0 %v511
        %584 = vmatpush.bf16.msra.mxu0 %v510
        %585 = vmatpush.bf16.msra.mxu0 %v509
        %586 = vmatmul.bf16.gmra.mxu0 %v366
        %v587 = vpop.f32.mrf.mxu0
        %v588 = vadd.f32 %v575, %v587
        %v589 = vpop.f32.mrf.mxu0
        %590 = vdwg.mxu0
        %591 = vmatpush.bf16.msra.mxu0 %v524
        %592 = vmatpush.bf16.msra.mxu0 %v523
        %593 = vmatpush.bf16.msra.mxu0 %v522
        %594 = vmatpush.bf16.msra.mxu0 %v521
        %595 = vmatpush.bf16.msra.mxu0 %v520
        %596 = vmatpush.bf16.msra.mxu0 %v519
        %597 = vmatpush.bf16.msra.mxu0 %v518
        %598 = vmatpush.bf16.msra.mxu0 %v517
        %599 = vmatmul.bf16.gmra.mxu0 %v367
        %v600 = vpop.f32.mrf.mxu0
        %v601 = vadd.f32 %v588, %v600
        %v602 = vpop.f32.mrf.mxu0
        %603 = vdwg.mxu0
        %604 = vmatpush.bf16.msra.mxu0 %v532
        %605 = vmatpush.bf16.msra.mxu0 %v531
        %606 = vmatpush.bf16.msra.mxu0 %v530
        %607 = vmatpush.bf16.msra.mxu0 %v529
        %608 = vmatpush.bf16.msra.mxu0 %v528
        %609 = vmatpush.bf16.msra.mxu0 %v527
        %610 = vmatpush.bf16.msra.mxu0 %v526
        %611 = vmatpush.bf16.msra.mxu0 %v525
        %612 = vmatmul.bf16.gmra.mxu0 %v368
        %v613 = vpop.f32.mrf.mxu0
        %v614 = vadd.f32 %v601, %v613
        %v615 = vpop.f32.mrf.mxu0
        %616 = vdwg.mxu0
        %v617 = vadd.f32 %v292, %v614
        %618 = vst [vmem:[#allocation2] sm:$0xff] %v617
        %p619 = scmp.eq.s32.totalorder %s23, 35
        // Predicated region
        $region41: #{_conv2d_jit.1} parent=35 // pred_check
          %p620 = pneg %p619
        $region42: #{_conv2d_jit.1} parent=35 // pred_check_branch
          %622 = sbr.rel (%p620) target = $region44
        $region43: #{_conv2d_jit.1} parent=35 // pred_region
          %v623 = vld [vmem:[#allocation2] sm:$0xff]
          %v624 = vld [vmem:[%s283] sm:$0x1]
          %v626 = vperm.slane %v624, 0
          %v628 = vmul.f32 %v623, %v626
          %v629 = vld [vmem:[%s286] sm:$0x1]
          %v631 = vperm.slane %v629, 0
          %v633 = vadd.f32 %v628, %v631
          %v634 = vmax.f32 %v633, 0.0
          %635 = vst [vmem:[#allocation3] sm:$0xff] %v634
        $region44: #{_conv2d_jit.1} parent=35 // pred_fallthru
          _
        // Predicated region
        $region45: #{_conv2d_jit.1} parent=35 // pred_check
          %p636 = pneg %p163
        $region46: #{_conv2d_jit.1} parent=35 // pred_check_branch
          %638 = sbr.rel (%p636) target = $region48
        $region47: #{_conv2d_jit.1} parent=35 // pred_region
          %640 = vsyncadd [#allocation4], 0
          %s641 = sadd.s32 %s22, %s21
          %s642 = smul.addr %s641, 8
          %s643 = scalar_lea.hbm %s4, %s642
          %s645 = sshll.u32 [#allocation3], 4
          %s646 = int_to_ptr.vmem [resolvable:$true] %s645
          %s647 = sshll.u32 %s643, 4
          %s648 = int_to_ptr.hbm [resolvable:$true] %s647
          %650 = dma.vmem_to_hbm [thread:$0]  %s646, 128, %s648, [#allocation4]
        $region48: #{_conv2d_jit.1} parent=35 // pred_fallthru
          _
        // Predicated region
        $region49: #{_conv2d_jit.1} parent=35 // pred_check
          %p651 = pneg %p163
        $region50: #{_conv2d_jit.1} parent=35 // pred_check_branch
          %653 = sbr.rel (%p651) target = $region52
        $region51: #{_conv2d_jit.1} parent=35 // pred_region
          %655 = dma.done [#allocation4], 128
        $region52: #{_conv2d_jit.1} parent=35 // pred_fallthru
          _
      $region36: #{_conv2d_jit.1} parent=5 // pred_fallthru
        _
      %p656 = scmp.le.s32.totalorder 2, %s11
      // Predicated region
      $region53: #{_conv2d_jit.1} parent=5 // pred_check
        %p657 = pneg %p656
      $region54: #{_conv2d_jit.1} parent=5 // pred_check_branch
        %659 = sbr.rel (%p657) target = $region56
      $region55: #{_conv2d_jit.1} parent=5 // pred_region
        %s660 = ssub.s32 %s11, 2
      $region56: #{_conv2d_jit.1} parent=5 // pred_fallthru
        _
    $region6: #{_conv2d_jit.1} parent=1 // loop_footer
      %s15 = sadd.s32 1, %s11
    $region7: #{_conv2d_jit.1} parent=1 // loop_footer_branch
      %10 = sbr.rel target = $region3
    $region8: #{_conv2d_jit.1} parent=1 // loop_exit
      _
    %661 = vsyncpa [#allocation4], 1
    %s662 = scalar_lea.sflag [#allocation4], 1
    %663 = vsyncpa %s662, 1

</llo_original>
